<compile_context>
chip_gen: v7x
topology: tpu7x:2x2x1
jax: 0.10.0
libtpu: 0.0.40
codegen_flags: <defaults>
</compile_context>

<pallas_src>
import jax
import jax.numpy as jnp
from jax.experimental import pallas as pl
from jax.experimental.pallas import tpu as pltpu


def _round_up(x, m):
    return ((x + m - 1) // m) * m


def _decoder_kernel(nodes_ref, wqm_ref, wqf_ref, wql_ref, wkv_ref, bkv_ref,
                    wo_ref, out_ref):
    TB, N, D = nodes_ref.shape
    nodes3 = nodes_ref[...]                                    # (TB, N, D)

    # Context pieces; Wq is pre-split so no lane-axis concatenation is needed.
    mean = jnp.mean(nodes3, axis=1)                            # (TB, D)
    first = nodes3[:, 0, :]                                    # (TB, D)
    last = nodes3[:, N - 1, :]                                 # (TB, D)

    q = (jnp.dot(mean, wqm_ref[...], preferred_element_type=jnp.float32)
         + jnp.dot(first, wqf_ref[...], preferred_element_type=jnp.float32)
         + jnp.dot(last, wql_ref[...], preferred_element_type=jnp.float32))   # (TB, D) f32
    # (bq is folded into the k-half of bkv.)

    # Fused K|V projection: one (TB*N, D) @ (D, 2D) MXU matmul, f32 accumulation.
    nodes2 = nodes3.reshape(TB * N, D)
    kv = jnp.dot(nodes2, wkv_ref[...],
                 preferred_element_type=jnp.float32) + bkv_ref[...]           # (TB*N, 2D) f32
    kv3 = kv.reshape(TB, N, 2 * D)
    k = kv3[:, :, :D]                                          # (TB, N, D), carries bq + bk
    v = kv3[:, :, D:]                                          # (TB, N, D), carries bv

    # Additive-attention compatibility + tanh; score = <u, wo> via VPU mul + lane reduce
    # (avoids a width-1 MXU matmul). bo is dropped: softmax is shift-invariant.
    u = jnp.tanh(q[:, None, :] + k)                            # (TB, N, D) f32
    scores = jnp.sum(u * wo_ref[...], axis=-1)                 # (TB, N)

    # Softmax over nodes (torch Softmax(dim=1) on [B, N, 1]).
    m = jnp.max(scores, axis=1, keepdims=True)
    e = jnp.exp(scores - m)
    attn = e / jnp.sum(e, axis=1, keepdims=True)               # (TB, N)

    # Attention-weighted value aggregation.
    out_ref[...] = jnp.sum(attn[:, :, None] * v, axis=1).astype(out_ref.dtype)  # (TB, D)


def transformer_decoder_pallas(nodes_embs, params, *, block_b=128, matmul_dtype=None):
    """nodes_embs: [B, N, D] float32. Returns [B, D] float32."""
    B, N, D = nodes_embs.shape
    wqT, bq, wkT, bk, wvT, bv, woT, bo = params
    del bo  # softmax shift-invariance: adding a constant to all scores is a no-op

    # Wrapper-side parameter fusion / splitting (one-time, outside the kernel).
    wq_mean = wqT[0:D, :]                                  # (D, D)
    wq_first = wqT[D:2 * D, :]                             # (D, D)
    wq_last = wqT[2 * D:3 * D, :]                          # (D, D)
    wkv = jnp.concatenate([wkT, wvT], axis=1)              # (D, 2D)  fused Wk|Wv
    bkv = jnp.concatenate([bq + bk, bv], axis=1)           # (1, 2D)  bq folded into k-bias
    wo_row = woT.T                                         # (1, D)

    nodes = nodes_embs
    if matmul_dtype is not None:
        # bf16 MXU path for v6e/v7x; biases / wo / elementwise math stay f32.
        nodes = nodes.astype(matmul_dtype)
        wq_mean = wq_mean.astype(matmul_dtype)
        wq_first = wq_first.astype(matmul_dtype)
        wq_last = wq_last.astype(matmul_dtype)
        wkv = wkv.astype(matmul_dtype)

    # Batch tile: multiple of 8 sublanes; pad B so the tile divides it.
    TB = _round_up(min(block_b, _round_up(B, 8)), 8)
    B_pad = _round_up(B, TB)
    if B_pad != B:
        nodes = jnp.pad(nodes, ((0, B_pad - B), (0, 0), (0, 0)))

    const = lambda b: (0, 0)
    out = pl.pallas_call(
        _decoder_kernel,
        out_shape=jax.ShapeDtypeStruct((B_pad, D), jnp.float32),
        grid_spec=pltpu.PrefetchScalarGridSpec(
            num_scalar_prefetch=0,
            grid=(B_pad // TB,),
            in_specs=[
                pl.BlockSpec((TB, N, D), lambda b: (b, 0, 0)),   # nodes tile
                pl.BlockSpec((D, D), const),                     # Wq[mean]
                pl.BlockSpec((D, D), const),                     # Wq[first]
                pl.BlockSpec((D, D), const),                     # Wq[last]
                pl.BlockSpec((D, 2 * D), const),                 # fused Wk|Wv
                pl.BlockSpec((1, 2 * D), const),                 # fused (bq+bk)|bv
                pl.BlockSpec((1, D), const),                     # wo row
            ],
            out_specs=pl.BlockSpec((TB, D), lambda b: (b, 0)),
        ),
        compiler_params=pltpu.CompilerParams(
            dimension_semantics=("parallel",)),
    )(nodes, wq_mean, wq_first, wq_last, wkv, bkv, wo_row)
    return out[:B]


def init_params(key, embedding_dim):
    """Deterministic init matching the PyTorch layer shapes.
    nn.Linear(in, out): weight (out, in) xavier_uniform, bias uniform(-1/sqrt(in), 1/sqrt(in)).
    Weights stored pre-transposed as (in, out) for x @ W^T convenience."""
    D = embedding_dim
    ks = jax.random.split(key, 8)

    def xavier(k, fan_in, fan_out):
        bound = jnp.sqrt(6.0 / (fan_in + fan_out))
        w = jax.random.uniform(k, (fan_out, fan_in), jnp.float32, -bound, bound)
        return w.T  # (in, out)

    def bias(k, fan_in, fan_out):
        bound = 1.0 / jnp.sqrt(fan_in)
        return jax.random.uniform(k, (1, fan_out), jnp.float32, -bound, bound)

    wqT = xavier(ks[0], 3 * D, D); bq = bias(ks[1], 3 * D, D)
    wkT = xavier(ks[2], D, D);     bk = bias(ks[3], D, D)
    wvT = xavier(ks[4], D, D);     bv = bias(ks[5], D, D)
    woT = xavier(ks[6], D, 1);     bo = bias(ks[7], D, 1)
    return (wqT, bq, wkT, bk, wvT, bv, woT, bo)


def reference_jax(nodes_embs, params):
    wqT, bq, wkT, bk, wvT, bv, woT, bo = params
    ctx = jnp.concatenate(
        [jnp.mean(nodes_embs, axis=1), nodes_embs[:, 0, :], nodes_embs[:, -1, :]],
        axis=-1)                                           # [B, 3D]
    q = ctx @ wqT + bq                                     # [B, D]
    k = nodes_embs @ wkT + bk                              # [B, N, D]
    v = nodes_embs @ wvT + bv                              # [B, N, D]
    scores = jnp.tanh(q[:, None, :] + k) @ woT + bo        # [B, N, 1]
    attn = jax.nn.softmax(scores, axis=1)                  # [B, N, 1]
    return jnp.sum(attn * v, axis=1)                       # [B, D]


if __name__ == "__main__":
    D = 32
    key = jax.random.PRNGKey(0)
    k1, k2, k_par = jax.random.split(key, 3)
    params = init_params(k_par, D)

    # Case 1: tiny batch (exercises batch padding, single grid step).
    B, N = 2, 8
    nodes_embs = jax.random.normal(k1, (B, N, D), jnp.float32)
    out = jax.block_until_ready(transformer_decoder_pallas(nodes_embs, params))
    ref = reference_jax(nodes_embs, params)
    assert out.shape == (B, D)
    assert jnp.allclose(out, ref, atol=1e-5, rtol=1e-5), (
        f"case1 max err {jnp.max(jnp.abs(out - ref))}")

    # Case 2: batch spanning multiple grid steps (TB=8 -> grid of 3).
    B2, N2 = 20, 8
    nodes_embs2 = jax.random.normal(k2, (B2, N2, D), jnp.float32)
    out2 = jax.block_until_ready(
        transformer_decoder_pallas(nodes_embs2, params, block_b=8))
    ref2 = reference_jax(nodes_embs2, params)
    assert out2.shape == (B2, D)
    assert jnp.allclose(out2, ref2, atol=1e-5, rtol=1e-5), (
        f"case2 max err {jnp.max(jnp.abs(out2 - ref2))}")

    print("KERNEL_OK")
</pallas_src>

<mosaic_0001>
module attributes {stable_mosaic.version = 11 : i64} {
  func.func @_decoder_kernel(%arg0: i32, %arg1: memref<8x8x32xf32, #tpu.memory_space<vmem>>, %arg2: memref<32x32xf32, #tpu.memory_space<vmem>>, %arg3: memref<32x32xf32, #tpu.memory_space<vmem>>, %arg4: memref<32x32xf32, #tpu.memory_space<vmem>>, %arg5: memref<32x64xf32, #tpu.memory_space<vmem>>, %arg6: memref<1x64xf32, #tpu.memory_space<vmem>>, %arg7: memref<1x32xf32, #tpu.memory_space<vmem>>, %arg8: memref<8x32xf32, #tpu.memory_space<vmem>>) attributes {dimension_semantics = [#tpu.dimension_semantics<parallel>], iteration_bounds = array<i64: 1>, scalar_prefetch = 0 : i64, scratch_operands = 0 : i64, tpu.core_type = #tpu.core_type<tc>, window_params = [{transform_indices = @transform_0, window_bounds = array<i64: 8, 8, 32>}, {pipeline_mode = #tpu.pipeline_mode<synchronous>, transform_indices = @transform_1, window_bounds = array<i64: 32, 32>}, {pipeline_mode = #tpu.pipeline_mode<synchronous>, transform_indices = @transform_2, window_bounds = array<i64: 32, 32>}, {pipeline_mode = #tpu.pipeline_mode<synchronous>, transform_indices = @transform_3, window_bounds = array<i64: 32, 32>}, {pipeline_mode = #tpu.pipeline_mode<synchronous>, transform_indices = @transform_4, window_bounds = array<i64: 32, 64>}, {pipeline_mode = #tpu.pipeline_mode<synchronous>, transform_indices = @transform_5, window_bounds = array<i64: 1, 64>}, {pipeline_mode = #tpu.pipeline_mode<synchronous>, transform_indices = @transform_6, window_bounds = array<i64: 1, 32>}, {transform_indices = @transform_7, window_bounds = array<i64: 8, 32>}]} {
    %c0 = arith.constant 0 : index
    %c0_0 = arith.constant 0 : index
    %c0_1 = arith.constant 0 : index
    %0 = vector.load %arg1[%c0, %c0_0, %c0_1] : memref<8x8x32xf32, #tpu.memory_space<vmem>>, vector<8x8x32xf32>
    %cst = arith.constant dense<0.000000e+00> : vector<8x32xf32>
    %1 = vector.multi_reduction <add>, %0, %cst [1] : vector<8x8x32xf32> to vector<8x32xf32>
    %cst_2 = arith.constant 8.000000e+00 : f32
    %2 = vector.broadcast %cst_2 : f32 to vector<8x32xf32>
    %3 = arith.divf %1, %2 : vector<8x32xf32>
    %4 = vector.extract_strided_slice %0 {offsets = [0, 0, 0], sizes = [8, 1, 32], strides = [1, 1, 1]} : vector<8x8x32xf32> to vector<8x1x32xf32>
    %5 = vector.shape_cast %4 : vector<8x1x32xf32> to vector<8x32xf32>
    %6 = vector.extract_strided_slice %0 {offsets = [0, 7, 0], sizes = [8, 1, 32], strides = [1, 1, 1]} : vector<8x8x32xf32> to vector<8x1x32xf32>
    %7 = vector.shape_cast %6 : vector<8x1x32xf32> to vector<8x32xf32>
    %c0_3 = arith.constant 0 : index
    %c0_4 = arith.constant 0 : index
    %8 = vector.load %arg2[%c0_3, %c0_4] : memref<32x32xf32, #tpu.memory_space<vmem>>, vector<32x32xf32>
    %cst_5 = arith.constant dense<0.000000e+00> : vector<8x32xf32>
    %9 = tpu.matmul %3, %8, %cst_5 {dimension_numbers = #tpu.dot_dimension_numbers<[1], [0], [0], [1], [0, 0, 1, 1], [], []>} : vector<8x32xf32>, vector<32x32xf32>, vector<8x32xf32> -> vector<8x32xf32>
    %c0_6 = arith.constant 0 : index
    %c0_7 = arith.constant 0 : index
    %10 = vector.load %arg3[%c0_6, %c0_7] : memref<32x32xf32, #tpu.memory_space<vmem>>, vector<32x32xf32>
    %cst_8 = arith.constant dense<0.000000e+00> : vector<8x32xf32>
    %11 = tpu.matmul %5, %10, %cst_8 {dimension_numbers = #tpu.dot_dimension_numbers<[1], [0], [0], [1], [0, 0, 1, 1], [], []>} : vector<8x32xf32>, vector<32x32xf32>, vector<8x32xf32> -> vector<8x32xf32>
    %12 = arith.addf %9, %11 : vector<8x32xf32>
    %c0_9 = arith.constant 0 : index
    %c0_10 = arith.constant 0 : index
    %13 = vector.load %arg4[%c0_9, %c0_10] : memref<32x32xf32, #tpu.memory_space<vmem>>, vector<32x32xf32>
    %cst_11 = arith.constant dense<0.000000e+00> : vector<8x32xf32>
    %14 = tpu.matmul %7, %13, %cst_11 {dimension_numbers = #tpu.dot_dimension_numbers<[1], [0], [0], [1], [0, 0, 1, 1], [], []>} : vector<8x32xf32>, vector<32x32xf32>, vector<8x32xf32> -> vector<8x32xf32>
    %15 = arith.addf %12, %14 : vector<8x32xf32>
    %16 = vector.shape_cast %0 : vector<8x8x32xf32> to vector<64x32xf32>
    %c0_12 = arith.constant 0 : index
    %c0_13 = arith.constant 0 : index
    %17 = vector.load %arg5[%c0_12, %c0_13] : memref<32x64xf32, #tpu.memory_space<vmem>>, vector<32x64xf32>
    %cst_14 = arith.constant dense<0.000000e+00> : vector<64x64xf32>
    %18 = tpu.matmul %16, %17, %cst_14 {dimension_numbers = #tpu.dot_dimension_numbers<[1], [0], [0], [1], [0, 0, 1, 1], [], []>} : vector<64x32xf32>, vector<32x64xf32>, vector<64x64xf32> -> vector<64x64xf32>
    %c0_15 = arith.constant 0 : index
    %c0_16 = arith.constant 0 : index
    %19 = vector.load %arg6[%c0_15, %c0_16] : memref<1x64xf32, #tpu.memory_space<vmem>>, vector<1x64xf32>
    %20 = vector.broadcast %19 : vector<1x64xf32> to vector<64x64xf32>
    %21 = arith.addf %18, %20 : vector<64x64xf32>
    %22 = vector.shape_cast %21 : vector<64x64xf32> to vector<8x8x64xf32>
    %23 = vector.extract_strided_slice %22 {offsets = [0, 0, 0], sizes = [8, 8, 32], strides = [1, 1, 1]} : vector<8x8x64xf32> to vector<8x8x32xf32>
    %24 = vector.extract_strided_slice %22 {offsets = [0, 0, 32], sizes = [8, 8, 32], strides = [1, 1, 1]} : vector<8x8x64xf32> to vector<8x8x32xf32>
    %25 = vector.shape_cast %15 : vector<8x32xf32> to vector<8x1x32xf32>
    %26 = vector.broadcast %25 : vector<8x1x32xf32> to vector<8x8x32xf32>
    %27 = arith.addf %26, %23 : vector<8x8x32xf32>
    %28 = math.tanh %27 : vector<8x8x32xf32>
    %c0_17 = arith.constant 0 : index
    %c0_18 = arith.constant 0 : index
    %29 = vector.load %arg7[%c0_17, %c0_18] : memref<1x32xf32, #tpu.memory_space<vmem>>, vector<1x32xf32>
    %30 = vector.shape_cast %29 : vector<1x32xf32> to vector<1x1x32xf32>
    %31 = vector.broadcast %30 : vector<1x1x32xf32> to vector<8x8x32xf32>
    %32 = arith.mulf %28, %31 : vector<8x8x32xf32>
    %cst_19 = arith.constant dense<0.000000e+00> : vector<8x8xf32>
    %33 = vector.multi_reduction <add>, %32, %cst_19 [2] : vector<8x8x32xf32> to vector<8x8xf32>
    %cst_20 = arith.constant dense<0xFF800000> : vector<8xf32>
    %34 = vector.multi_reduction <maximumf>, %33, %cst_20 [1] : vector<8x8xf32> to vector<8xf32>
    %35 = vector.shape_cast %34 : vector<8xf32> to vector<8x1xf32>
    %36 = vector.broadcast %35 : vector<8x1xf32> to vector<8x8xf32>
    %37 = arith.subf %33, %36 : vector<8x8xf32>
    %38 = math.exp %37 : vector<8x8xf32>
    %cst_21 = arith.constant dense<0.000000e+00> : vector<8xf32>
    %39 = vector.multi_reduction <add>, %38, %cst_21 [1] : vector<8x8xf32> to vector<8xf32>
    %40 = vector.shape_cast %39 : vector<8xf32> to vector<8x1xf32>
    %41 = vector.broadcast %40 : vector<8x1xf32> to vector<8x8xf32>
    %42 = arith.divf %38, %41 : vector<8x8xf32>
    %43 = vector.shape_cast %42 : vector<8x8xf32> to vector<8x8x1xf32>
    %44 = vector.broadcast %43 : vector<8x8x1xf32> to vector<8x8x32xf32>
    %45 = arith.mulf %44, %24 : vector<8x8x32xf32>
    %cst_22 = arith.constant dense<0.000000e+00> : vector<8x32xf32>
    %46 = vector.multi_reduction <add>, %45, %cst_22 [1] : vector<8x8x32xf32> to vector<8x32xf32>
    %c0_23 = arith.constant 0 : index
    %c0_24 = arith.constant 0 : index
    %47 = vector.load %arg8[%c0_23, %c0_24] : memref<8x32xf32, #tpu.memory_space<vmem>>, vector<8x32xf32>
    tpu.vector_store %arg8[%c0_23, %c0_24], %46 {strides = array<i32>} : memref<8x32xf32, #tpu.memory_space<vmem>>, vector<8x32xf32>,
    return
  }
  func.func @transform_0(%arg0: i32) -> (i32, i32, i32) {
    %c0_i32 = arith.constant 0 : i32
    %c0_i32_0 = arith.constant 0 : i32
    %c0_i32_1 = arith.constant 0 : i32
    return %arg0, %c0_i32, %c0_i32_0 : i32, i32, i32
  }
  func.func @transform_1(%arg0: i32) -> (i32, i32) {
    %c0_i32 = arith.constant 0 : i32
    %c0_i32_0 = arith.constant 0 : i32
    %c0_i32_1 = arith.constant 0 : i32
    return %c0_i32, %c0_i32_0 : i32, i32
  }
  func.func @transform_2(%arg0: i32) -> (i32, i32) {
    %c0_i32 = arith.constant 0 : i32
    %c0_i32_0 = arith.constant 0 : i32
    %c0_i32_1 = arith.constant 0 : i32
    return %c0_i32, %c0_i32_0 : i32, i32
  }
  func.func @transform_3(%arg0: i32) -> (i32, i32) {
    %c0_i32 = arith.constant 0 : i32
    %c0_i32_0 = arith.constant 0 : i32
    %c0_i32_1 = arith.constant 0 : i32
    return %c0_i32, %c0_i32_0 : i32, i32
  }
  func.func @transform_4(%arg0: i32) -> (i32, i32) {
    %c0_i32 = arith.constant 0 : i32
    %c0_i32_0 = arith.constant 0 : i32
    %c0_i32_1 = arith.constant 0 : i32
    return %c0_i32, %c0_i32_0 : i32, i32
  }
  func.func @transform_5(%arg0: i32) -> (i32, i32) {
    %c0_i32 = arith.constant 0 : i32
    %c0_i32_0 = arith.constant 0 : i32
    %c0_i32_1 = arith.constant 0 : i32
    return %c0_i32, %c0_i32_0 : i32, i32
  }
  func.func @transform_6(%arg0: i32) -> (i32, i32) {
    %c0_i32 = arith.constant 0 : i32
    %c0_i32_0 = arith.constant 0 : i32
    %c0_i32_1 = arith.constant 0 : i32
    return %c0_i32, %c0_i32_0 : i32, i32
  }
  func.func @transform_7(%arg0: i32) -> (i32, i32) {
    %c0_i32 = arith.constant 0 : i32
    %c0_i32_0 = arith.constant 0 : i32
    return %arg0, %c0_i32 : i32, i32
  }
}

</mosaic_0001>

<llo_original>
// kernel: tpu_custom_call.1
$region0: #{tpu_custom_call.1}
  #allocation0 [shape = 'u32[]', space=smem, size = 0x4, offset = 0x4, fixed_abs, tag = 'smem constant byte address 0x4 - core index']
  #allocation1 [shape = 'u32[144,128]{1,0:T(1,128)}', space=vmem, size = 0x12000, scoped, tag = 'internal scratch']
  %s0 = inlined_call_operand.hbm [shape: f32[8,8,32], index: 0, kind: input, shape index: {}]
  %s1 = inlined_call_operand.hbm [shape: f32[32,32], index: 1, kind: input, shape index: {}]
  %s2 = inlined_call_operand.hbm [shape: f32[32,32], index: 2, kind: input, shape index: {}]
  %s3 = inlined_call_operand.hbm [shape: f32[32,32], index: 3, kind: input, shape index: {}]
  %s4 = inlined_call_operand.hbm [shape: f32[32,64], index: 4, kind: input, shape index: {}]
  %s5 = inlined_call_operand.vmem [shape: f32[1,64], index: 5, kind: input, shape index: {}]
  %s6 = inlined_call_operand.vmem [shape: f32[1,32], index: 6, kind: input, shape index: {}]
  %s7 = inlined_call_operand.hbm [shape: f32[8,32], index: 7, kind: output, shape index: {}]
  %s8 = sld [smem:[#allocation0]]
  $region58: #{tpu_custom_call.1} parent=0
    _
  %s10 = ssub.s32 1, %s8
  %s11 = scalar_select 0, %s10, %s8
  $region1: #{tpu_custom_call.1} parent=0
    #allocation2 [shape = 'u8[32768]{0}', space=vmem, size = 0x8000, scoped, tag = 'input window, operand 0, single buffered']
    #allocation3 [shape = 's32[1]{0}', space=sflag, size = 0x4, scoped, tag = 'scoped memory for tpu_custom_call.1']
    #allocation4 [shape = 's32[1]{0}', space=sflag, size = 0x4, scoped, tag = 'scoped memory for tpu_custom_call.1']
    #allocation5 [shape = 'u8[16384]{0}', space=vmem, size = 0x4000, scoped, tag = 'input window, operand 1, single buffered']
    #allocation6 [shape = 's32[1]{0}', space=sflag, size = 0x4, scoped, tag = 'scoped memory for tpu_custom_call.1']
    #allocation7 [shape = 'u8[16384]{0}', space=vmem, size = 0x4000, scoped, tag = 'input window, operand 2, single buffered']
    #allocation8 [shape = 'u8[16384]{0}', space=vmem, size = 0x4000, scoped, tag = 'input window, operand 3, single buffered']
    #allocation9 [shape = 's32[1]{0}', space=sflag, size = 0x4, scoped, tag = 'scoped memory for tpu_custom_call.1']
    #allocation10 [shape = 'u8[16384]{0}', space=vmem, size = 0x4000, scoped, tag = 'input window, operand 4, single buffered']
    #allocation11 [shape = 'u8[4096]{0}', space=vmem, size = 0x1000, scoped, tag = 'output window, operand 0, single buffered']
    %12 = vsyncpa [#allocation3], 0
    %13 = vsyncpa [#allocation6], 0
    %14 = vsyncpa [#allocation9], 0
    %15 = vsyncpa [#allocation4], 0
    // Predicated region
    $region2: #{tpu_custom_call.1} parent=1 // pred_check
      _
    $region3: #{tpu_custom_call.1} parent=1 // pred_check_branch
      %17 = sbr.rel (0) target = $region5
    $region4: #{tpu_custom_call.1} parent=1 // pred_region
      %s19 = ssub.s32 1024, 1024
      %20 = vsyncadd [#allocation3], %s19
      %s21 = sshll.u32 [#allocation2], 4
      %s22 = int_to_ptr.vmem [resolvable:$true] %s21
      %27 = dma.hbm_to_vmem [thread:$0]  %s0, 1024, %s22, [#allocation3], 128, 128, 8
    $region5: #{tpu_custom_call.1} parent=1 // pred_fallthru
      _
    // Predicated region
    $region6: #{tpu_custom_call.1} parent=1 // pred_check
      _
    $region7: #{tpu_custom_call.1} parent=1 // pred_check_branch
      %29 = sbr.rel (0) target = $region9
    $region8: #{tpu_custom_call.1} parent=1 // pred_region
      %s31 = ssub.s32 512, 512
      %32 = vsyncadd [#allocation6], %s31
      %s33 = sshll.u32 [#allocation5], 4
      %s34 = int_to_ptr.vmem [resolvable:$true] %s33
      %39 = dma.hbm_to_vmem [thread:$0]  %s1, 512, %s34, [#allocation6], 128, 128, 8
    $region9: #{tpu_custom_call.1} parent=1 // pred_fallthru
      _
    // Predicated region
    $region10: #{tpu_custom_call.1} parent=1 // pred_check
      _
    $region11: #{tpu_custom_call.1} parent=1 // pred_check_branch
      %41 = sbr.rel (0) target = $region13
    $region12: #{tpu_custom_call.1} parent=1 // pred_region
      %s43 = ssub.s32 512, 512
      %44 = vsyncadd [#allocation6], %s43
      %s45 = sshll.u32 [#allocation7], 4
      %s46 = int_to_ptr.vmem [resolvable:$true] %s45
      %51 = dma.hbm_to_vmem [thread:$0]  %s2, 512, %s46, [#allocation6], 128, 128, 8
    $region13: #{tpu_custom_call.1} parent=1 // pred_fallthru
      _
    // Predicated region
    $region14: #{tpu_custom_call.1} parent=1 // pred_check
      _
    $region15: #{tpu_custom_call.1} parent=1 // pred_check_branch
      %53 = sbr.rel (0) target = $region17
    $region16: #{tpu_custom_call.1} parent=1 // pred_region
      %s55 = ssub.s32 512, 512
      %56 = vsyncadd [#allocation9], %s55
      %s57 = sshll.u32 [#allocation8], 4
      %s58 = int_to_ptr.vmem [resolvable:$true] %s57
      %63 = dma.hbm_to_vmem [thread:$0]  %s3, 512, %s58, [#allocation9], 128, 128, 8
    $region17: #{tpu_custom_call.1} parent=1 // pred_fallthru
      _
    // Predicated region
    $region18: #{tpu_custom_call.1} parent=1 // pred_check
      _
    $region19: #{tpu_custom_call.1} parent=1 // pred_check_branch
      %65 = sbr.rel (0) target = $region21
    $region20: #{tpu_custom_call.1} parent=1 // pred_region
      %s67 = ssub.s32 512, 512
      %68 = vsyncadd [#allocation9], %s67
      %s69 = sshll.u32 [#allocation10], 4
      %s70 = int_to_ptr.vmem [resolvable:$true] %s69
      %75 = dma.hbm_to_vmem [thread:$0]  %s4, 512, %s70, [#allocation9], 128, 128, 8
    $region21: #{tpu_custom_call.1} parent=1 // pred_fallthru
      _
    // Predicated region
    $region22: #{tpu_custom_call.1} parent=1 // pred_check
      _
    $region23: #{tpu_custom_call.1} parent=1 // pred_check_branch
      %77 = sbr.rel (0) target = $region25
    $region24: #{tpu_custom_call.1} parent=1 // pred_region
      _
    $region25: #{tpu_custom_call.1} parent=1 // pred_fallthru
      _
    // Predicated region
    $region26: #{tpu_custom_call.1} parent=1 // pred_check
      _
    $region27: #{tpu_custom_call.1} parent=1 // pred_check_branch
      %79 = sbr.rel (0) target = $region29
    $region28: #{tpu_custom_call.1} parent=1 // pred_region
      _
    $region29: #{tpu_custom_call.1} parent=1 // pred_fallthru
      _
    // Predicated region
    $region30: #{tpu_custom_call.1} parent=1 // pred_check
      _
    $region31: #{tpu_custom_call.1} parent=1 // pred_check_branch
      %81 = sbr.rel (0) target = $region33
    $region32: #{tpu_custom_call.1} parent=1 // pred_region
      %82 = dma.done [#allocation3], 1024
    $region33: #{tpu_custom_call.1} parent=1 // pred_fallthru
      _
    // Predicated region
    $region34: #{tpu_custom_call.1} parent=1 // pred_check
      _
    $region35: #{tpu_custom_call.1} parent=1 // pred_check_branch
      %84 = sbr.rel (0) target = $region37
    $region36: #{tpu_custom_call.1} parent=1 // pred_region
      %85 = dma.done [#allocation6], 512
    $region37: #{tpu_custom_call.1} parent=1 // pred_fallthru
      _
    // Predicated region
    $region38: #{tpu_custom_call.1} parent=1 // pred_check
      _
    $region39: #{tpu_custom_call.1} parent=1 // pred_check_branch
      %87 = sbr.rel (0) target = $region41
    $region40: #{tpu_custom_call.1} parent=1 // pred_region
      %88 = dma.done [#allocation6], 512
    $region41: #{tpu_custom_call.1} parent=1 // pred_fallthru
      _
    // Predicated region
    $region42: #{tpu_custom_call.1} parent=1 // pred_check
      _
    $region43: #{tpu_custom_call.1} parent=1 // pred_check_branch
      %90 = sbr.rel (0) target = $region45
    $region44: #{tpu_custom_call.1} parent=1 // pred_region
      %91 = dma.done [#allocation9], 512
    $region45: #{tpu_custom_call.1} parent=1 // pred_fallthru
      _
    // Predicated region
    $region46: #{tpu_custom_call.1} parent=1 // pred_check
      _
    $region47: #{tpu_custom_call.1} parent=1 // pred_check_branch
      %93 = sbr.rel (0) target = $region49
    $region48: #{tpu_custom_call.1} parent=1 // pred_region
      %94 = dma.done [#allocation9], 512
    $region49: #{tpu_custom_call.1} parent=1 // pred_fallthru
      _
    %v95 = vld [vmem:[#allocation2] sm:$0xff]
    %v96 = vld [vmem:[#allocation2 + $0x8] sm:$0xff]
    %v97 = vld [vmem:[#allocation2 + $0x10] sm:$0xff]
    %v98 = vld [vmem:[#allocation2 + $0x18] sm:$0xff]
    %v99 = vld [vmem:[#allocation2 + $0x20] sm:$0xff]
    %v100 = vld [vmem:[#allocation2 + $0x28] sm:$0xff]
    %v101 = vld [vmem:[#allocation2 + $0x30] sm:$0xff]
    %v102 = vld [vmem:[#allocation2 + $0x38] sm:$0xff]
    %vm103 = vcmask 261120
    %v104 = vsel %vm103, %v95, 0.0
    %v105 = vrot.slane %v104, 4
    %v106 = vadd.f32 %v104, %v105
    %v107 = vrot.slane %v106, 2
    %v108 = vadd.f32 %v106, %v107
    %v109 = vrot.slane %v108, 1
    %v110 = vadd.f32 %v108, %v109
    %v111 = vsel %vm103, %v96, 0.0
    %v112 = vrot.slane %v111, 4
    %v113 = vadd.f32 %v111, %v112
    %v114 = vrot.slane %v113, 2
    %v115 = vadd.f32 %v113, %v114
    %v116 = vrot.slane %v115, 1
    %v117 = vadd.f32 %v115, %v116
    %v118 = vsel %vm103, %v97, 0.0
    %v119 = vrot.slane %v118, 4
    %v120 = vadd.f32 %v118, %v119
    %v121 = vrot.slane %v120, 2
    %v122 = vadd.f32 %v120, %v121
    %v123 = vrot.slane %v122, 1
    %v124 = vadd.f32 %v122, %v123
    %v125 = vsel %vm103, %v98, 0.0
    %v126 = vrot.slane %v125, 4
    %v127 = vadd.f32 %v125, %v126
    %v128 = vrot.slane %v127, 2
    %v129 = vadd.f32 %v127, %v128
    %v130 = vrot.slane %v129, 1
    %v131 = vadd.f32 %v129, %v130
    %v132 = vsel %vm103, %v99, 0.0
    %v133 = vrot.slane %v132, 4
    %v134 = vadd.f32 %v132, %v133
    %v135 = vrot.slane %v134, 2
    %v136 = vadd.f32 %v134, %v135
    %v137 = vrot.slane %v136, 1
    %v138 = vadd.f32 %v136, %v137
    %v139 = vsel %vm103, %v100, 0.0
    %v140 = vrot.slane %v139, 4
    %v141 = vadd.f32 %v139, %v140
    %v142 = vrot.slane %v141, 2
    %v143 = vadd.f32 %v141, %v142
    %v144 = vrot.slane %v143, 1
    %v145 = vadd.f32 %v143, %v144
    %v146 = vsel %vm103, %v101, 0.0
    %v147 = vrot.slane %v146, 4
    %v148 = vadd.f32 %v146, %v147
    %v149 = vrot.slane %v148, 2
    %v150 = vadd.f32 %v148, %v149
    %v151 = vrot.slane %v150, 1
    %v152 = vadd.f32 %v150, %v151
    %v153 = vsel %vm103, %v102, 0.0
    %v154 = vrot.slane %v153, 4
    %v155 = vadd.f32 %v153, %v154
    %v156 = vrot.slane %v155, 2
    %v157 = vadd.f32 %v155, %v156
    %v158 = vrot.slane %v157, 1
    %v159 = vadd.f32 %v157, %v158
    %v160 = vrcp.pop 8.0
    %v161 = vmul.f32 %v110, %v160
    %v162 = vmul.f32 %v117, %v160
    %v163 = vmul.f32 %v124, %v160
    %v164 = vmul.f32 %v131, %v160
    %v165 = vmul.f32 %v138, %v160
    %v166 = vmul.f32 %v145, %v160
    %v167 = vmul.f32 %v152, %v160
    %v168 = vmul.f32 %v159, %v160
    %v169 = vld [vmem:[#allocation5] sm:$0xff]
    %v170 = vld [vmem:[#allocation5 + $0x8] sm:$0xff]
    %v171 = vld [vmem:[#allocation5 + $0x10] sm:$0xff]
    %v172 = vld [vmem:[#allocation5 + $0x18] sm:$0xff]
    %v173 = vld [vmem:[#allocation7] sm:$0xff]
    %v174 = vld [vmem:[#allocation7 + $0x8] sm:$0xff]
    %v175 = vld [vmem:[#allocation7 + $0x10] sm:$0xff]
    %v176 = vld [vmem:[#allocation7 + $0x18] sm:$0xff]
    %v185 = vrot.slane %v96, 7
    %vm186 = vcmask 1041409
    %v187 = vsel %vm186, %v185, %v95
    %v188 = vrot.slane %v97, 6
    %vm189 = vcmask 1042434
    %v190 = vsel %vm189, %v188, %v187
    %v191 = vrot.slane %v98, 5
    %vm192 = vcmask 1043459
    %v193 = vsel %vm192, %v191, %v190
    %v194 = vrot.slane %v99, 4
    %vm195 = vcmask 1044484
    %v196 = vsel %vm195, %v194, %v193
    %v197 = vrot.slane %v100, 3
    %vm198 = vcmask 1045509
    %v199 = vsel %vm198, %v197, %v196
    %v200 = vrot.slane %v101, 2
    %vm201 = vcmask 1046534
    %v202 = vsel %vm201, %v200, %v199
    %v203 = vrot.slane %v102, 1
    %vm204 = vcmask 1047559
    %v205 = vsel %vm204, %v203, %v202
    %v206 = vsel %vm103, %v205, 0
    %208 = vmatprep.subr.mxu0 0.0
    %209 = vmatpush1.msra.mxu0 %v173
    %210 = vmatprep.subr.mxu0 0.0
    %211 = vmatpush1.msra.mxu0 %v174
    %212 = vmatprep.subr.mxu0 0.0
    %213 = vmatpush1.msra.mxu0 %v175
    %214 = vmatprep.subr.mxu0 0.0
    %215 = vmatpush1.msra.mxu0 %v176
    %216 = vmatprep.subr.mxu0 0.0
    %217 = vmatpush1.msra.mxu0 0.0
    %218 = vmatprep.subr.mxu0 0.0
    %219 = vmatpush1.msra.mxu0 0.0
    %220 = vmatprep.subr.mxu0 0.0
    %221 = vmatpush1.msra.mxu0 0.0
    %222 = vmatprep.subr.mxu0 0.0
    %223 = vmatpush1.msra.mxu0 0.0
    %224 = vmatprep.subr.mxu0 0.0
    %225 = vmatpush1.msra.mxu0 0.0
    %226 = vmatprep.subr.mxu0 0.0
    %227 = vmatpush1.msra.mxu0 0.0
    %228 = vmatprep.subr.mxu0 0.0
    %229 = vmatpush1.msra.mxu0 0.0
    %230 = vmatprep.subr.mxu0 0.0
    %231 = vmatpush1.msra.mxu0 0.0
    %232 = vmatprep.subr.mxu0 0.0
    %233 = vmatpush1.msra.mxu0 0.0
    %234 = vmatprep.subr.mxu0 0.0
    %235 = vmatpush1.msra.mxu0 0.0
    %236 = vmatprep.subr.mxu0 0.0
    %237 = vmatpush1.msra.mxu0 0.0
    %238 = vmatprep.subr.mxu0 0.0
    %239 = vmatpush1.msra.mxu0 0.0
    %240 = vmatprep.subr.mxu0 0.0
    %241 = vmatpush1.msra.mxu0 0.0
    %242 = vmatprep.subr.mxu0 0.0
    %243 = vmatpush1.msra.mxu0 0.0
    %244 = vmatprep.subr.mxu0 0.0
    %245 = vmatpush1.msra.mxu0 0.0
    %246 = vmatprep.subr.mxu0 0.0
    %247 = vmatpush1.msra.mxu0 0.0
    %248 = vmatprep.subr.mxu0 0.0
    %249 = vmatpush1.msra.mxu0 0.0
    %250 = vmatprep.subr.mxu0 0.0
    %251 = vmatpush1.msra.mxu0 0.0
    %252 = vmatprep.subr.mxu0 0.0
    %253 = vmatpush1.msra.mxu0 0.0
    %254 = vmatprep.subr.mxu0 0.0
    %255 = vmatpush1.msra.mxu0 0.0
    %256 = vmatprep.subr.mxu0 0.0
    %257 = vmatpush1.msra.mxu0 0.0
    %258 = vmatprep.subr.mxu0 0.0
    %259 = vmatpush1.msra.mxu0 0.0
    %260 = vmatprep.subr.mxu0 0.0
    %261 = vmatpush1.msra.mxu0 0.0
    %262 = vmatprep.subr.mxu0 0.0
    %263 = vmatpush1.msra.mxu0 0.0
    %264 = vmatprep.subr.mxu0 0.0
    %265 = vmatpush1.msra.mxu0 0.0
    %266 = vmatprep.subr.mxu0 0.0
    %267 = vmatpush1.msra.mxu0 0.0
    %268 = vmatprep.subr.mxu0 0.0
    %269 = vmatpush1.msra.mxu0 0.0
    %270 = vmatprep.subr.mxu0 0.0
    %271 = vmatpush1.msra.mxu0 0.0
    %272 = vmatprep.mubr.f32.mxu0 0.0
    %273 = vmatmul.mubr.f32.gmra.mrb[0].mxu0 %v206
    %v274 = vpop.f32.mrb[0].mxu0
    %v275 = vadd.f32 0.0, %v274
    %v276 = vpop.f32.mrb[0].mxu0
    %277 = vdwg.mxu0
    %v286 = vsel %vm186, %v162, %v161
    %v287 = vsel %vm189, %v163, %v286
    %v288 = vsel %vm192, %v164, %v287
    %v289 = vsel %vm195, %v165, %v288
    %v290 = vsel %vm198, %v166, %v289
    %v291 = vsel %vm201, %v167, %v290
    %v292 = vsel %vm204, %v168, %v291
    %v293 = vsel %vm103, %v292, 0
    %295 = vmatprep.subr.mxu0 0.0
    %296 = vmatpush1.msra.mxu0 %v169
    %297 = vmatprep.subr.mxu0 0.0
    %298 = vmatpush1.msra.mxu0 %v170
    %299 = vmatprep.subr.mxu0 0.0
    %300 = vmatpush1.msra.mxu0 %v171
    %301 = vmatprep.subr.mxu0 0.0
    %302 = vmatpush1.msra.mxu0 %v172
    %303 = vmatprep.subr.mxu0 0.0
    %304 = vmatpush1.msra.mxu0 0.0
    %305 = vmatprep.subr.mxu0 0.0
    %306 = vmatpush1.msra.mxu0 0.0
    %307 = vmatprep.subr.mxu0 0.0
    %308 = vmatpush1.msra.mxu0 0.0
    %309 = vmatprep.subr.mxu0 0.0
    %310 = vmatpush1.msra.mxu0 0.0
    %311 = vmatprep.subr.mxu0 0.0
    %312 = vmatpush1.msra.mxu0 0.0
    %313 = vmatprep.subr.mxu0 0.0
    %314 = vmatpush1.msra.mxu0 0.0
    %315 = vmatprep.subr.mxu0 0.0
    %316 = vmatpush1.msra.mxu0 0.0
    %317 = vmatprep.subr.mxu0 0.0
    %318 = vmatpush1.msra.mxu0 0.0
    %319 = vmatprep.subr.mxu0 0.0
    %320 = vmatpush1.msra.mxu0 0.0
    %321 = vmatprep.subr.mxu0 0.0
    %322 = vmatpush1.msra.mxu0 0.0
    %323 = vmatprep.subr.mxu0 0.0
    %324 = vmatpush1.msra.mxu0 0.0
    %325 = vmatprep.subr.mxu0 0.0
    %326 = vmatpush1.msra.mxu0 0.0
    %327 = vmatprep.subr.mxu0 0.0
    %328 = vmatpush1.msra.mxu0 0.0
    %329 = vmatprep.subr.mxu0 0.0
    %330 = vmatpush1.msra.mxu0 0.0
    %331 = vmatprep.subr.mxu0 0.0
    %332 = vmatpush1.msra.mxu0 0.0
    %333 = vmatprep.subr.mxu0 0.0
    %334 = vmatpush1.msra.mxu0 0.0
    %335 = vmatprep.subr.mxu0 0.0
    %336 = vmatpush1.msra.mxu0 0.0
    %337 = vmatprep.subr.mxu0 0.0
    %338 = vmatpush1.msra.mxu0 0.0
    %339 = vmatprep.subr.mxu0 0.0
    %340 = vmatpush1.msra.mxu0 0.0
    %341 = vmatprep.subr.mxu0 0.0
    %342 = vmatpush1.msra.mxu0 0.0
    %343 = vmatprep.subr.mxu0 0.0
    %344 = vmatpush1.msra.mxu0 0.0
    %345 = vmatprep.subr.mxu0 0.0
    %346 = vmatpush1.msra.mxu0 0.0
    %347 = vmatprep.subr.mxu0 0.0
    %348 = vmatpush1.msra.mxu0 0.0
    %349 = vmatprep.subr.mxu0 0.0
    %350 = vmatpush1.msra.mxu0 0.0
    %351 = vmatprep.subr.mxu0 0.0
    %352 = vmatpush1.msra.mxu0 0.0
    %353 = vmatprep.subr.mxu0 0.0
    %354 = vmatpush1.msra.mxu0 0.0
    %355 = vmatprep.subr.mxu0 0.0
    %356 = vmatpush1.msra.mxu0 0.0
    %357 = vmatprep.subr.mxu0 0.0
    %358 = vmatpush1.msra.mxu0 0.0
    %359 = vmatprep.mubr.f32.mxu0 0.0
    %360 = vmatmul.mubr.f32.gmra.mrb[0].mxu0 %v293
    %v361 = vpop.f32.mrb[0].mxu0
    %v362 = vadd.f32 %v275, %v361
    %v363 = vpop.f32.mrb[0].mxu0
    %364 = vdwg.mxu0
    %v365 = vld [vmem:[#allocation8] sm:$0xff]
    %v366 = vld [vmem:[#allocation8 + $0x8] sm:$0xff]
    %v367 = vld [vmem:[#allocation8 + $0x10] sm:$0xff]
    %v368 = vld [vmem:[#allocation8 + $0x18] sm:$0xff]
    %v369 = vrot.slane %v95, 7
    %v370 = vrot.slane %v96, 6
    %v371 = vsel %vm186, %v370, %v369
    %v372 = vrot.slane %v97, 5
    %v373 = vsel %vm189, %v372, %v371
    %v374 = vrot.slane %v98, 4
    %v375 = vsel %vm192, %v374, %v373
    %v376 = vrot.slane %v99, 3
    %v377 = vsel %vm195, %v376, %v375
    %v378 = vrot.slane %v100, 2
    %v379 = vsel %vm198, %v378, %v377
    %v380 = vrot.slane %v101, 1
    %v381 = vsel %vm201, %v380, %v379
    %v382 = vsel %vm204, %v102, %v381
    %v383 = vsel %vm103, %v382, 0
    %385 = vmatprep.subr.mxu0 0.0
    %386 = vmatpush1.msra.mxu0 %v365
    %387 = vmatprep.subr.mxu0 0.0
    %388 = vmatpush1.msra.mxu0 %v366
    %389 = vmatprep.subr.mxu0 0.0
    %390 = vmatpush1.msra.mxu0 %v367
    %391 = vmatprep.subr.mxu0 0.0
    %392 = vmatpush1.msra.mxu0 %v368
    %393 = vmatprep.subr.mxu0 0.0
    %394 = vmatpush1.msra.mxu0 0.0
    %395 = vmatprep.subr.mxu0 0.0
    %396 = vmatpush1.msra.mxu0 0.0
    %397 = vmatprep.subr.mxu0 0.0
    %398 = vmatpush1.msra.mxu0 0.0
    %399 = vmatprep.subr.mxu0 0.0
    %400 = vmatpush1.msra.mxu0 0.0
    %401 = vmatprep.subr.mxu0 0.0
    %402 = vmatpush1.msra.mxu0 0.0
    %403 = vmatprep.subr.mxu0 0.0
    %404 = vmatpush1.msra.mxu0 0.0
    %405 = vmatprep.subr.mxu0 0.0
    %406 = vmatpush1.msra.mxu0 0.0
    %407 = vmatprep.subr.mxu0 0.0
    %408 = vmatpush1.msra.mxu0 0.0
    %409 = vmatprep.subr.mxu0 0.0
    %410 = vmatpush1.msra.mxu0 0.0
    %411 = vmatprep.subr.mxu0 0.0
    %412 = vmatpush1.msra.mxu0 0.0
    %413 = vmatprep.subr.mxu0 0.0
    %414 = vmatpush1.msra.mxu0 0.0
    %415 = vmatprep.subr.mxu0 0.0
    %416 = vmatpush1.msra.mxu0 0.0
    %417 = vmatprep.subr.mxu0 0.0
    %418 = vmatpush1.msra.mxu0 0.0
    %419 = vmatprep.subr.mxu0 0.0
    %420 = vmatpush1.msra.mxu0 0.0
    %421 = vmatprep.subr.mxu0 0.0
    %422 = vmatpush1.msra.mxu0 0.0
    %423 = vmatprep.subr.mxu0 0.0
    %424 = vmatpush1.msra.mxu0 0.0
    %425 = vmatprep.subr.mxu0 0.0
    %426 = vmatpush1.msra.mxu0 0.0
    %427 = vmatprep.subr.mxu0 0.0
    %428 = vmatpush1.msra.mxu0 0.0
    %429 = vmatprep.subr.mxu0 0.0
    %430 = vmatpush1.msra.mxu0 0.0
    %431 = vmatprep.subr.mxu0 0.0
    %432 = vmatpush1.msra.mxu0 0.0
    %433 = vmatprep.subr.mxu0 0.0
    %434 = vmatpush1.msra.mxu0 0.0
    %435 = vmatprep.subr.mxu0 0.0
    %436 = vmatpush1.msra.mxu0 0.0
    %437 = vmatprep.subr.mxu0 0.0
    %438 = vmatpush1.msra.mxu0 0.0
    %439 = vmatprep.subr.mxu0 0.0
    %440 = vmatpush1.msra.mxu0 0.0
    %441 = vmatprep.subr.mxu0 0.0
    %442 = vmatpush1.msra.mxu0 0.0
    %443 = vmatprep.subr.mxu0 0.0
    %444 = vmatpush1.msra.mxu0 0.0
    %445 = vmatprep.subr.mxu0 0.0
    %446 = vmatpush1.msra.mxu0 0.0
    %447 = vmatprep.subr.mxu0 0.0
    %448 = vmatpush1.msra.mxu0 0.0
    %449 = vmatprep.mubr.f32.mxu0 0.0
    %450 = vmatmul.mubr.f32.gmra.mrb[0].mxu0 %v383
    %v451 = vpop.f32.mrb[0].mxu0
    %v452 = vadd.f32 0.0, %v451
    %v453 = vpop.f32.mrb[0].mxu0
    %454 = vdwg.mxu0
    %v455 = vadd.f32 %v362, %v452
    %v456 = vld [vmem:[#allocation10] sm:$0xff]
    %v457 = vld [vmem:[#allocation10 + $0x8] sm:$0xff]
    %v458 = vld [vmem:[#allocation10 + $0x10] sm:$0xff]
    %v459 = vld [vmem:[#allocation10 + $0x18] sm:$0xff]
    %v460 = vld [vmem:[%s5] sm:$0x1]
    %v462 = vlaneseq
    %v463 = vshrl.u32 %v462, 7
    %v464 = vsub.s32 0, %v463
    %v465 = vrot.slane %v460, %v464
    %v467 = vsel %vm103, %v95, 0
    %v469 = vsel %vm103, %v96, 0
    %v471 = vsel %vm103, %v97, 0
    %v473 = vsel %vm103, %v98, 0
    %v475 = vsel %vm103, %v99, 0
    %v477 = vsel %vm103, %v100, 0
    %v479 = vsel %vm103, %v101, 0
    %v481 = vsel %vm103, %v102, 0
    %483 = vmatprep.subr.mxu0 0.0
    %484 = vmatpush1.msra.mxu0 %v456
    %485 = vmatprep.subr.mxu0 0.0
    %486 = vmatpush1.msra.mxu0 %v457
    %487 = vmatprep.subr.mxu0 0.0
    %488 = vmatpush1.msra.mxu0 %v458
    %489 = vmatprep.subr.mxu0 0.0
    %490 = vmatpush1.msra.mxu0 %v459
    %491 = vmatprep.subr.mxu0 0.0
    %492 = vmatpush1.msra.mxu0 0.0
    %493 = vmatprep.subr.mxu0 0.0
    %494 = vmatpush1.msra.mxu0 0.0
    %495 = vmatprep.subr.mxu0 0.0
    %496 = vmatpush1.msra.mxu0 0.0
    %497 = vmatprep.subr.mxu0 0.0
    %498 = vmatpush1.msra.mxu0 0.0
    %499 = vmatprep.subr.mxu0 0.0
    %500 = vmatpush1.msra.mxu0 0.0
    %501 = vmatprep.subr.mxu0 0.0
    %502 = vmatpush1.msra.mxu0 0.0
    %503 = vmatprep.subr.mxu0 0.0
    %504 = vmatpush1.msra.mxu0 0.0
    %505 = vmatprep.subr.mxu0 0.0
    %506 = vmatpush1.msra.mxu0 0.0
    %507 = vmatprep.subr.mxu0 0.0
    %508 = vmatpush1.msra.mxu0 0.0
    %509 = vmatprep.subr.mxu0 0.0
    %510 = vmatpush1.msra.mxu0 0.0
    %511 = vmatprep.subr.mxu0 0.0
    %512 = vmatpush1.msra.mxu0 0.0
    %513 = vmatprep.subr.mxu0 0.0
    %514 = vmatpush1.msra.mxu0 0.0
    %515 = vmatprep.subr.mxu0 0.0
    %516 = vmatpush1.msra.mxu0 0.0
    %517 = vmatprep.subr.mxu0 0.0
    %518 = vmatpush1.msra.mxu0 0.0
    %519 = vmatprep.subr.mxu0 0.0
    %520 = vmatpush1.msra.mxu0 0.0
    %521 = vmatprep.subr.mxu0 0.0
    %522 = vmatpush1.msra.mxu0 0.0
    %523 = vmatprep.subr.mxu0 0.0
    %524 = vmatpush1.msra.mxu0 0.0
    %525 = vmatprep.subr.mxu0 0.0
    %526 = vmatpush1.msra.mxu0 0.0
    %527 = vmatprep.subr.mxu0 0.0
    %528 = vmatpush1.msra.mxu0 0.0
    %529 = vmatprep.subr.mxu0 0.0
    %530 = vmatpush1.msra.mxu0 0.0
    %531 = vmatprep.subr.mxu0 0.0
    %532 = vmatpush1.msra.mxu0 0.0
    %533 = vmatprep.subr.mxu0 0.0
    %534 = vmatpush1.msra.mxu0 0.0
    %535 = vmatprep.subr.mxu0 0.0
    %536 = vmatpush1.msra.mxu0 0.0
    %537 = vmatprep.subr.mxu0 0.0
    %538 = vmatpush1.msra.mxu0 0.0
    %539 = vmatprep.subr.mxu0 0.0
    %540 = vmatpush1.msra.mxu0 0.0
    %541 = vmatprep.subr.mxu0 0.0
    %542 = vmatpush1.msra.mxu0 0.0
    %543 = vmatprep.subr.mxu0 0.0
    %544 = vmatpush1.msra.mxu0 0.0
    %545 = vmatprep.subr.mxu0 0.0
    %546 = vmatpush1.msra.mxu0 0.0
    %547 = vmatprep.mubr.f32.mxu0 0.0
    %548 = vmatmul.mubr.f32.gmra.mrb[0].mxu0 %v467
    %v549 = vpop.f32.mrb[0].mxu0
    %v550 = vadd.f32 %v465, %v549
    %v551 = vpop.f32.mrb[0].mxu0
    %552 = vmatprep.mubr.f32.mxu0 0.0
    %553 = vmatmul.mubr.f32.gmra.mrb[0].mxu0 %v469
    %v554 = vpop.f32.mrb[0].mxu0
    %v555 = vadd.f32 %v465, %v554
    %v556 = vpop.f32.mrb[0].mxu0
    %557 = vmatprep.mubr.f32.mxu0 0.0
    %558 = vmatmul.mubr.f32.gmra.mrb[0].mxu0 %v471
    %v559 = vpop.f32.mrb[0].mxu0
    %v560 = vadd.f32 %v465, %v559
    %v561 = vpop.f32.mrb[0].mxu0
    %562 = vmatprep.mubr.f32.mxu0 0.0
    %563 = vmatmul.mubr.f32.gmra.mrb[0].mxu0 %v473
    %v564 = vpop.f32.mrb[0].mxu0
    %v565 = vadd.f32 %v465, %v564
    %v566 = vpop.f32.mrb[0].mxu0
    %567 = vmatprep.mubr.f32.mxu0 0.0
    %568 = vmatmul.mubr.f32.gmra.mrb[0].mxu0 %v475
    %v569 = vpop.f32.mrb[0].mxu0
    %v570 = vadd.f32 %v465, %v569
    %v571 = vpop.f32.mrb[0].mxu0
    %572 = vmatprep.mubr.f32.mxu0 0.0
    %573 = vmatmul.mubr.f32.gmra.mrb[0].mxu0 %v477
    %v574 = vpop.f32.mrb[0].mxu0
    %v575 = vadd.f32 %v465, %v574
    %v576 = vpop.f32.mrb[0].mxu0
    %577 = vmatprep.mubr.f32.mxu0 0.0
    %578 = vmatmul.mubr.f32.gmra.mrb[0].mxu0 %v479
    %v579 = vpop.f32.mrb[0].mxu0
    %v580 = vadd.f32 %v465, %v579
    %v581 = vpop.f32.mrb[0].mxu0
    %582 = vmatprep.mubr.f32.mxu0 0.0
    %583 = vmatmul.mubr.f32.gmra.mrb[0].mxu0 %v481
    %v584 = vpop.f32.mrb[0].mxu0
    %v585 = vadd.f32 %v465, %v584
    %v586 = vpop.f32.mrb[0].mxu0
    %587 = vdwg.mxu0
    %v589 = vcombine.high %v455, %v455
    %v591 = vunpack.c.l.s4 1966171168
    %v592 = vunpack.c.0.s8 %v591
    %v593 = vlaneseq
    %v594 = vshrl.u32 %v593, 7
    %v595 = vsub.s32 %v592, %v594
    %v596 = vrot.slane %v455, %v595
    %v598 = vunpack.c.l.s4 1966171168
    %v599 = vunpack.c.0.s8 %v598
    %v600 = vlaneseq
    %v601 = vshrl.u32 %v600, 7
    %v602 = vsub.s32 %v599, %v601
    %v603 = vrot.slane %v589, %v602
    %v604 = vcombine.high %v596, %v596
    %v605 = vcombine.high %v603, %v603
    %v607 = vunpack.c.l.s4 1966171168
    %v608 = vunpack.c.0.s8 %v607
    %v609 = vlaneseq
    %v610 = vshrl.u32 %v609, 7
    %v611 = vsub.s32 %v608, %v610
    %v612 = vrot.slane %v596, %v611
    %v614 = vunpack.c.l.s4 1966171168
    %v615 = vunpack.c.0.s8 %v614
    %v616 = vlaneseq
    %v617 = vshrl.u32 %v616, 7
    %v618 = vsub.s32 %v615, %v617
    %v619 = vrot.slane %v603, %v618
    %v621 = vunpack.c.l.s4 1966171168
    %v622 = vunpack.c.0.s8 %v621
    %v623 = vlaneseq
    %v624 = vshrl.u32 %v623, 7
    %v625 = vsub.s32 %v622, %v624
    %v626 = vrot.slane %v604, %v625
    %v628 = vunpack.c.l.s4 1966171168
    %v629 = vunpack.c.0.s8 %v628
    %v630 = vlaneseq
    %v631 = vshrl.u32 %v630, 7
    %v632 = vsub.s32 %v629, %v631
    %v633 = vrot.slane %v605, %v632
    %v634 = vcombine.high %v612, %v612
    %v635 = vcombine.high %v619, %v619
    %v636 = vcombine.high %v626, %v626
    %v637 = vcombine.high %v633, %v633
    %v638 = vlaneseq
    %v639 = vshrl.u32 %v638, 7
    %v640 = vsub.s32 0, %v639
    %v641 = vrot.slane %v612, %v640
    %v642 = vlaneseq
    %v643 = vshrl.u32 %v642, 7
    %v644 = vsub.s32 0, %v643
    %v645 = vrot.slane %v626, %v644
    %v646 = vlaneseq
    %v647 = vshrl.u32 %v646, 7
    %v648 = vsub.s32 0, %v647
    %v649 = vrot.slane %v634, %v648
    %v650 = vlaneseq
    %v651 = vshrl.u32 %v650, 7
    %v652 = vsub.s32 0, %v651
    %v653 = vrot.slane %v636, %v652
    %v654 = vlaneseq
    %v655 = vshrl.u32 %v654, 7
    %v656 = vsub.s32 0, %v655
    %v657 = vrot.slane %v619, %v656
    %v658 = vlaneseq
    %v659 = vshrl.u32 %v658, 7
    %v660 = vsub.s32 0, %v659
    %v661 = vrot.slane %v633, %v660
    %v662 = vlaneseq
    %v663 = vshrl.u32 %v662, 7
    %v664 = vsub.s32 0, %v663
    %v665 = vrot.slane %v635, %v664
    %v666 = vlaneseq
    %v667 = vshrl.u32 %v666, 7
    %v668 = vsub.s32 0, %v667
    %v669 = vrot.slane %v637, %v668
    %v678 = vadd.f32 %v641, %v550
    %v679 = vadd.f32 %v645, %v555
    %v680 = vadd.f32 %v649, %v560
    %v681 = vadd.f32 %v653, %v565
    %v682 = vadd.f32 %v657, %v570
    %v683 = vadd.f32 %v661, %v575
    %v684 = vadd.f32 %v665, %v580
    %v685 = vadd.f32 %v669, %v585
    %v686 = vtanh.pop %v678
    %v687 = vtanh.pop %v679
    %v688 = vtanh.pop %v680
    %v689 = vtanh.pop %v681
    %v690 = vtanh.pop %v682
    %v691 = vtanh.pop %v683
    %v692 = vtanh.pop %v684
    %v693 = vtanh.pop %v685
    %v694 = vld [vmem:[%s6] sm:$0x1]
    %v696 = vlaneseq
    %v697 = vshrl.u32 %v696, 7
    %v698 = vsub.s32 0, %v697
    %v699 = vrot.slane %v694, %v698
    %v701 = vmul.f32 %v686, %v699
    %v702 = vmul.f32 %v687, %v699
    %v703 = vmul.f32 %v688, %v699
    %v704 = vmul.f32 %v689, %v699
    %v705 = vmul.f32 %v690, %v699
    %v706 = vmul.f32 %v691, %v699
    %v707 = vmul.f32 %v692, %v699
    %v708 = vmul.f32 %v693, %v699
    %v709 = vsel %vm103, %v701, 0.0
    %710 = vadd.xlane.f32.xlu0 %v709
    %v711 = vpop.xlane.xlu0 %710
    %v712 = vsel %vm103, %v702, 0.0
    %713 = vadd.xlane.f32.xlu0 %v712
    %v714 = vpop.xlane.xlu0 %713
    %v715 = vsel %vm103, %v703, 0.0
    %716 = vadd.xlane.f32.xlu0 %v715
    %v717 = vpop.xlane.xlu0 %716
    %v718 = vsel %vm103, %v704, 0.0
    %719 = vadd.xlane.f32.xlu0 %v718
    %v720 = vpop.xlane.xlu0 %719
    %v721 = vsel %vm103, %v705, 0.0
    %722 = vadd.xlane.f32.xlu0 %v721
    %v723 = vpop.xlane.xlu0 %722
    %v724 = vsel %vm103, %v706, 0.0
    %725 = vadd.xlane.f32.xlu0 %v724
    %v726 = vpop.xlane.xlu0 %725
    %v727 = vsel %vm103, %v707, 0.0
    %728 = vadd.xlane.f32.xlu0 %v727
    %v729 = vpop.xlane.xlu0 %728
    %v730 = vsel %vm103, %v708, 0.0
    %731 = vadd.xlane.f32.xlu0 %v730
    %v732 = vpop.xlane.xlu0 %731
    %v741 = vlaneseq
    %v742 = vand.u32 %v741, 127
    %v743 = vlaneseq
    %v744 = vshrl.u32 %v743, 7
    %v745 = vsub.s32 %v742, %v744
    %v746 = vrot.slane %v711, %v745
    %v747 = vlaneseq
    %v748 = vshrl.u32 %v747, 7
    %v749 = vsub.s32 %v742, %v748
    %v750 = vrot.slane %v714, %v749
    %v751 = vlaneseq
    %v752 = vshrl.u32 %v751, 7
    %v753 = vsub.s32 %v742, %v752
    %v754 = vrot.slane %v717, %v753
    %v755 = vlaneseq
    %v756 = vshrl.u32 %v755, 7
    %v757 = vsub.s32 %v742, %v756
    %v758 = vrot.slane %v720, %v757
    %v759 = vlaneseq
    %v760 = vshrl.u32 %v759, 7
    %v761 = vsub.s32 %v742, %v760
    %v762 = vrot.slane %v723, %v761
    %v763 = vlaneseq
    %v764 = vshrl.u32 %v763, 7
    %v765 = vsub.s32 %v742, %v764
    %v766 = vrot.slane %v726, %v765
    %v767 = vlaneseq
    %v768 = vshrl.u32 %v767, 7
    %v769 = vsub.s32 %v742, %v768
    %v770 = vrot.slane %v729, %v769
    %v771 = vlaneseq
    %v772 = vshrl.u32 %v771, 7
    %v773 = vsub.s32 %v742, %v772
    %v774 = vrot.slane %v732, %v773
    %v775 = vsel %vm186, %v750, %v746
    %v776 = vsel %vm189, %v754, %v775
    %v777 = vsel %vm192, %v758, %v776
    %v778 = vsel %vm195, %v762, %v777
    %v779 = vsel %vm198, %v766, %v778
    %v780 = vsel %vm201, %v770, %v779
    %v781 = vsel %vm204, %v774, %v780
    %vm783 = vcmask 64512
    %v784 = vsel %vm783, %v781, -inf
    %785 = vmax.xlane.f32.xlu0 %v784
    %v786 = vpop.xlane.xlu0 %785
    %v788 = vlaneseq
    %v789 = vshrl.u32 %v788, 7
    %v790 = vsub.s32 0, %v789
    %v791 = vrot.slane %v786, %v790
    %v792 = vlaneseq
    %v793 = vshrl.u32 %v792, 7
    %v794 = vsub.s32 1, %v793
    %v795 = vrot.slane %v786, %v794
    %v796 = vlaneseq
    %v797 = vshrl.u32 %v796, 7
    %v798 = vsub.s32 2, %v797
    %v799 = vrot.slane %v786, %v798
    %v800 = vlaneseq
    %v801 = vshrl.u32 %v800, 7
    %v802 = vsub.s32 3, %v801
    %v803 = vrot.slane %v786, %v802
    %v804 = vlaneseq
    %v805 = vshrl.u32 %v804, 7
    %v806 = vsub.s32 4, %v805
    %v807 = vrot.slane %v786, %v806
    %v808 = vlaneseq
    %v809 = vshrl.u32 %v808, 7
    %v810 = vsub.s32 5, %v809
    %v811 = vrot.slane %v786, %v810
    %v812 = vlaneseq
    %v813 = vshrl.u32 %v812, 7
    %v814 = vsub.s32 6, %v813
    %v815 = vrot.slane %v786, %v814
    %v816 = vlaneseq
    %v817 = vshrl.u32 %v816, 7
    %v818 = vsub.s32 7, %v817
    %v819 = vrot.slane %v786, %v818
    %v828 = vsub.f32 %v711, %v791
    %v829 = vsub.f32 %v714, %v795
    %v830 = vsub.f32 %v717, %v799
    %v831 = vsub.f32 %v720, %v803
    %v832 = vsub.f32 %v723, %v807
    %v833 = vsub.f32 %v726, %v811
    %v834 = vsub.f32 %v729, %v815
    %v835 = vsub.f32 %v732, %v819
    %v836 = vmul.f32 %v828, 1.442695
    %v837 = vpow.pop %v836
    %v838 = vmul.f32 %v829, 1.442695
    %v839 = vpow.pop %v838
    %v840 = vmul.f32 %v830, 1.442695
    %v841 = vpow.pop %v840
    %v842 = vmul.f32 %v831, 1.442695
    %v843 = vpow.pop %v842
    %v844 = vmul.f32 %v832, 1.442695
    %v845 = vpow.pop %v844
    %v846 = vmul.f32 %v833, 1.442695
    %v847 = vpow.pop %v846
    %v848 = vmul.f32 %v834, 1.442695
    %v849 = vpow.pop %v848
    %v850 = vmul.f32 %v835, 1.442695
    %v851 = vpow.pop %v850
    %860 = vset.pattern.permute.xlu0 0
    %861 = vperm.xlu0 %860, %v837
    %v862 = vpop.permute.xlu0 %861
    %863 = vset.pattern.permute.xlu0 0
    %864 = vperm.xlu0 %863, %v839
    %v865 = vpop.permute.xlu0 %864
    %866 = vset.pattern.permute.xlu0 0
    %867 = vperm.xlu0 %866, %v841
    %v868 = vpop.permute.xlu0 %867
    %869 = vset.pattern.permute.xlu0 0
    %870 = vperm.xlu0 %869, %v843
    %v871 = vpop.permute.xlu0 %870
    %872 = vset.pattern.permute.xlu0 0
    %873 = vperm.xlu0 %872, %v845
    %v874 = vpop.permute.xlu0 %873
    %875 = vset.pattern.permute.xlu0 0
    %876 = vperm.xlu0 %875, %v847
    %v877 = vpop.permute.xlu0 %876
    %878 = vset.pattern.permute.xlu0 0
    %879 = vperm.xlu0 %878, %v849
    %v880 = vpop.permute.xlu0 %879
    %881 = vset.pattern.permute.xlu0 0
    %882 = vperm.xlu0 %881, %v851
    %v883 = vpop.permute.xlu0 %882
    %v884 = vlaneseq
    %v885 = vshrl.u32 %v884, 7
    %v886 = vsub.s32 %v742, %v885
    %v887 = vrot.slane %v862, %v886
    %v888 = vlaneseq
    %v889 = vshrl.u32 %v888, 7
    %v890 = vsub.s32 %v742, %v889
    %v891 = vrot.slane %v865, %v890
    %v892 = vlaneseq
    %v893 = vshrl.u32 %v892, 7
    %v894 = vsub.s32 %v742, %v893
    %v895 = vrot.slane %v868, %v894
    %v896 = vlaneseq
    %v897 = vshrl.u32 %v896, 7
    %v898 = vsub.s32 %v742, %v897
    %v899 = vrot.slane %v871, %v898
    %v900 = vlaneseq
    %v901 = vshrl.u32 %v900, 7
    %v902 = vsub.s32 %v742, %v901
    %v903 = vrot.slane %v874, %v902
    %v904 = vlaneseq
    %v905 = vshrl.u32 %v904, 7
    %v906 = vsub.s32 %v742, %v905
    %v907 = vrot.slane %v877, %v906
    %v908 = vlaneseq
    %v909 = vshrl.u32 %v908, 7
    %v910 = vsub.s32 %v742, %v909
    %v911 = vrot.slane %v880, %v910
    %v912 = vlaneseq
    %v913 = vshrl.u32 %v912, 7
    %v914 = vsub.s32 %v742, %v913
    %v915 = vrot.slane %v883, %v914
    %v916 = vsel %vm186, %v891, %v887
    %v917 = vsel %vm189, %v895, %v916
    %v918 = vsel %vm192, %v899, %v917
    %v919 = vsel %vm195, %v903, %v918
    %v920 = vsel %vm198, %v907, %v919
    %v921 = vsel %vm201, %v911, %v920
    %v922 = vsel %vm204, %v915, %v921
    %v924 = vsel %vm783, %v922, 0.0
    %925 = vadd.xlane.f32.xlu0 %v924
    %v926 = vpop.xlane.xlu0 %925
    %v928 = vlaneseq
    %v929 = vshrl.u32 %v928, 7
    %v930 = vsub.s32 0, %v929
    %v931 = vrot.slane %v926, %v930
    %v932 = vlaneseq
    %v933 = vshrl.u32 %v932, 7
    %v934 = vsub.s32 1, %v933
    %v935 = vrot.slane %v926, %v934
    %v936 = vlaneseq
    %v937 = vshrl.u32 %v936, 7
    %v938 = vsub.s32 2, %v937
    %v939 = vrot.slane %v926, %v938
    %v940 = vlaneseq
    %v941 = vshrl.u32 %v940, 7
    %v942 = vsub.s32 3, %v941
    %v943 = vrot.slane %v926, %v942
    %v944 = vlaneseq
    %v945 = vshrl.u32 %v944, 7
    %v946 = vsub.s32 4, %v945
    %v947 = vrot.slane %v926, %v946
    %v948 = vlaneseq
    %v949 = vshrl.u32 %v948, 7
    %v950 = vsub.s32 5, %v949
    %v951 = vrot.slane %v926, %v950
    %v952 = vlaneseq
    %v953 = vshrl.u32 %v952, 7
    %v954 = vsub.s32 6, %v953
    %v955 = vrot.slane %v926, %v954
    %v956 = vlaneseq
    %v957 = vshrl.u32 %v956, 7
    %v958 = vsub.s32 7, %v957
    %v959 = vrot.slane %v926, %v958
    %v968 = vrcp.pop %v931
    %v969 = vmul.f32 %v837, %v968
    %v970 = vrcp.pop %v935
    %v971 = vmul.f32 %v839, %v970
    %v972 = vrcp.pop %v939
    %v973 = vmul.f32 %v841, %v972
    %v974 = vrcp.pop %v943
    %v975 = vmul.f32 %v843, %v974
    %v976 = vrcp.pop %v947
    %v977 = vmul.f32 %v845, %v976
    %v978 = vrcp.pop %v951
    %v979 = vmul.f32 %v847, %v978
    %v980 = vrcp.pop %v955
    %v981 = vmul.f32 %v849, %v980
    %v982 = vrcp.pop %v959
    %v983 = vmul.f32 %v851, %v982
    %985 = vset.pattern.permute.xlu0 0
    %986 = vperm.xlu0 %985, %v969
    %v987 = vpop.permute.xlu0 %986
    %990 = vset.pattern.permute.xlu0 0
    %991 = vperm.xlu0 %990, %v971
    %v992 = vpop.permute.xlu0 %991
    %995 = vset.pattern.permute.xlu0 0
    %996 = vperm.xlu0 %995, %v973
    %v997 = vpop.permute.xlu0 %996
    %1000 = vset.pattern.permute.xlu0 0
    %1001 = vperm.xlu0 %1000, %v975
    %v1002 = vpop.permute.xlu0 %1001
    %1005 = vset.pattern.permute.xlu0 0
    %1006 = vperm.xlu0 %1005, %v977
    %v1007 = vpop.permute.xlu0 %1006
    %1010 = vset.pattern.permute.xlu0 0
    %1011 = vperm.xlu0 %1010, %v979
    %v1012 = vpop.permute.xlu0 %1011
    %1015 = vset.pattern.permute.xlu0 0
    %1016 = vperm.xlu0 %1015, %v981
    %v1017 = vpop.permute.xlu0 %1016
    %1020 = vset.pattern.permute.xlu0 0
    %1021 = vperm.xlu0 %1020, %v983
    %v1022 = vpop.permute.xlu0 %1021
    %v1024 = vmul.f32 %v987, %v550
    %v1025 = vmul.f32 %v992, %v555
    %v1026 = vmul.f32 %v997, %v560
    %v1027 = vmul.f32 %v1002, %v565
    %v1028 = vmul.f32 %v1007, %v570
    %v1029 = vmul.f32 %v1012, %v575
    %v1030 = vmul.f32 %v1017, %v580
    %v1031 = vmul.f32 %v1022, %v585
    %vm1032 = vcmask 523520
    %v1033 = vsel %vm1032, %v1024, 0.0
    %v1034 = vrot.slane %v1033, 4
    %v1035 = vadd.f32 %v1033, %v1034
    %v1036 = vrot.slane %v1035, 2
    %v1037 = vadd.f32 %v1035, %v1036
    %v1038 = vrot.slane %v1037, 1
    %v1039 = vadd.f32 %v1037, %v1038
    %v1040 = vsel %vm1032, %v1025, 0.0
    %v1041 = vrot.slane %v1040, 4
    %v1042 = vadd.f32 %v1040, %v1041
    %v1043 = vrot.slane %v1042, 2
    %v1044 = vadd.f32 %v1042, %v1043
    %v1045 = vrot.slane %v1044, 1
    %v1046 = vadd.f32 %v1044, %v1045
    %v1047 = vsel %vm1032, %v1026, 0.0
    %v1048 = vrot.slane %v1047, 4
    %v1049 = vadd.f32 %v1047, %v1048
    %v1050 = vrot.slane %v1049, 2
    %v1051 = vadd.f32 %v1049, %v1050
    %v1052 = vrot.slane %v1051, 1
    %v1053 = vadd.f32 %v1051, %v1052
    %v1054 = vsel %vm1032, %v1027, 0.0
    %v1055 = vrot.slane %v1054, 4
    %v1056 = vadd.f32 %v1054, %v1055
    %v1057 = vrot.slane %v1056, 2
    %v1058 = vadd.f32 %v1056, %v1057
    %v1059 = vrot.slane %v1058, 1
    %v1060 = vadd.f32 %v1058, %v1059
    %v1061 = vsel %vm1032, %v1028, 0.0
    %v1062 = vrot.slane %v1061, 4
    %v1063 = vadd.f32 %v1061, %v1062
    %v1064 = vrot.slane %v1063, 2
    %v1065 = vadd.f32 %v1063, %v1064
    %v1066 = vrot.slane %v1065, 1
    %v1067 = vadd.f32 %v1065, %v1066
    %v1068 = vsel %vm1032, %v1029, 0.0
    %v1069 = vrot.slane %v1068, 4
    %v1070 = vadd.f32 %v1068, %v1069
    %v1071 = vrot.slane %v1070, 2
    %v1072 = vadd.f32 %v1070, %v1071
    %v1073 = vrot.slane %v1072, 1
    %v1074 = vadd.f32 %v1072, %v1073
    %v1075 = vsel %vm1032, %v1030, 0.0
    %v1076 = vrot.slane %v1075, 4
    %v1077 = vadd.f32 %v1075, %v1076
    %v1078 = vrot.slane %v1077, 2
    %v1079 = vadd.f32 %v1077, %v1078
    %v1080 = vrot.slane %v1079, 1
    %v1081 = vadd.f32 %v1079, %v1080
    %v1082 = vsel %vm1032, %v1031, 0.0
    %v1083 = vrot.slane %v1082, 4
    %v1084 = vadd.f32 %v1082, %v1083
    %v1085 = vrot.slane %v1084, 2
    %v1086 = vadd.f32 %v1084, %v1085
    %v1087 = vrot.slane %v1086, 1
    %v1088 = vadd.f32 %v1086, %v1087
    %v1097 = vsel %vm186, %v1046, %v1039
    %v1098 = vsel %vm189, %v1053, %v1097
    %v1099 = vsel %vm192, %v1060, %v1098
    %v1100 = vsel %vm195, %v1067, %v1099
    %v1101 = vsel %vm198, %v1074, %v1100
    %v1102 = vsel %vm201, %v1081, %v1101
    %v1103 = vsel %vm204, %v1088, %v1102
    %1104 = vrot.lane.b32.xlu0 %v1103, 96
    %v1105 = vpop.permute.xlu0 %1104
    %1107 = vst.msk [vmem:[#allocation11] sm:$0xff] %vm103, %v1105
    // Predicated region
    $region50: #{tpu_custom_call.1} parent=1 // pred_check
      _
    $region51: #{tpu_custom_call.1} parent=1 // pred_check_branch
      %1109 = sbr.rel (0) target = $region53
    $region52: #{tpu_custom_call.1} parent=1 // pred_region
      %s1111 = ssub.s32 128, 128
      %1112 = vsyncadd [#allocation4], %s1111
      %s1114 = sshll.u32 [#allocation11], 4
      %s1115 = int_to_ptr.vmem [resolvable:$true] %s1114
      %1117 = dma.vmem_to_hbm [thread:$0]  %s1115, 128, %s7, [#allocation4]
    $region53: #{tpu_custom_call.1} parent=1 // pred_fallthru
      _
    // Predicated region
    $region54: #{tpu_custom_call.1} parent=1 // pred_check
      _
    $region55: #{tpu_custom_call.1} parent=1 // pred_check_branch
      %1119 = sbr.rel (0) target = $region57
    $region56: #{tpu_custom_call.1} parent=1 // pred_region
      %1120 = dma.done [#allocation4], 128
    $region57: #{tpu_custom_call.1} parent=1 // pred_fallthru
      _
    %1121 = vsyncpa [#allocation3], 1
    %1122 = vsyncpa [#allocation6], 1
    %1123 = vsyncpa [#allocation9], 1
    %1124 = vsyncpa [#allocation4], 1

</llo_original>
